<compile_context>
chip_gen: v6e
topology: v6e:2x2x1
jax: 0.10.0
libtpu: 0.0.40
codegen_flags: <defaults>
</compile_context>

<pallas_src>
import numpy as np
import jax
import jax.numpy as jnp
from jax.experimental import pallas as pl
from jax.experimental.pallas import tpu as pltpu


# --------------------------------------------------------------------------
# Schedule setup (glue, plain numpy — mirrors register_schedule exactly)
# --------------------------------------------------------------------------
def make_beta_schedule(schedule, n_timestep, linear_start=1e-4, linear_end=2e-2,
                       cosine_s=8e-3):
    if schedule == "linear":
        betas = (np.linspace(linear_start ** 0.5, linear_end ** 0.5, n_timestep,
                             dtype=np.float64) ** 2)
    elif schedule == "cosine":
        timesteps = (np.arange(n_timestep + 1, dtype=np.float64) / n_timestep
                     + cosine_s)
        alphas = timesteps / (1 + cosine_s) * np.pi / 2
        alphas = np.cos(alphas) ** 2
        alphas = alphas / alphas[0]
        betas = 1 - alphas[1:] / alphas[:-1]
        betas = np.clip(betas, 0, 0.999)
    else:
        raise NotImplementedError(schedule)
    return betas


class AbstractLowScaleModel:
    """JAX/Pallas port of the PyTorch AbstractLowScaleModel."""

    def __init__(self, noise_schedule_config=None):
        if noise_schedule_config is not None:
            self.register_schedule(**noise_schedule_config)

    def register_schedule(self, beta_schedule="linear", timesteps=1000,
                          linear_start=1e-4, linear_end=2e-2, cosine_s=8e-3):
        betas = make_beta_schedule(beta_schedule, timesteps,
                                   linear_start=linear_start,
                                   linear_end=linear_end, cosine_s=cosine_s)
        alphas = 1.0 - betas
        alphas_cumprod = np.cumprod(alphas, axis=0)
        alphas_cumprod_prev = np.append(1.0, alphas_cumprod[:-1])
        (timesteps,) = betas.shape
        self.num_timesteps = int(timesteps)
        self.linear_start = linear_start
        self.linear_end = linear_end
        assert alphas_cumprod.shape[0] == self.num_timesteps

        f32 = lambda a: jnp.asarray(a, dtype=jnp.float32)
        self.betas = f32(betas)
        self.alphas_cumprod = f32(alphas_cumprod)
        self.alphas_cumprod_prev = f32(alphas_cumprod_prev)
        self.sqrt_alphas_cumprod = f32(np.sqrt(alphas_cumprod))
        self.sqrt_one_minus_alphas_cumprod = f32(np.sqrt(1.0 - alphas_cumprod))
        self.log_one_minus_alphas_cumprod = f32(np.log(1.0 - alphas_cumprod))
        self.sqrt_recip_alphas_cumprod = f32(np.sqrt(1.0 / alphas_cumprod))
        self.sqrt_recipm1_alphas_cumprod = f32(np.sqrt(1.0 / alphas_cumprod - 1))

    # ---------------- forward: return (x, None) ----------------
    def forward(self, x):
        # Pure pass-through; no kernel (a Pallas copy here is wasted bandwidth).
        return x, None

    def __call__(self, x):
        return self.forward(x)

    def decode(self, x):
        return x

    # ---------------- q_sample: the actual hot path ----------------
    def q_sample(self, x_start, t, noise):
        return _q_sample_pallas(self.sqrt_alphas_cumprod,
                                self.sqrt_one_minus_alphas_cumprod,
                                x_start, t, noise)


# --------------------------------------------------------------------------
# Pallas q_sample kernel
# --------------------------------------------------------------------------
def _q_sample_kernel(a_ref, s_ref, x_ref, noise_ref, o_ref):
    # a_ref / s_ref: SMEM (B,) per-batch scales (pre-gathered in the wrapper)
    # x_ref / noise_ref / o_ref: VMEM (1, chunk_rows, LANE) lane-dense blocks
    b = pl.program_id(0)
    a = a_ref[b]
    s = s_ref[b]
    o_ref[...] = a * x_ref[...] + s * noise_ref[...]


_LANE_CANDIDATES = (1024, 512, 256, 128)
_TARGET_TILE_BYTES = 2 * 1024 * 1024   # per-tensor tile; x/noise/out double-buffered


def _choose_tiling(n_per_batch, itemsize):
    """Pick (padded_len, lane, rows, chunk_rows) for a lane-dense layout."""
    pad128 = -(-n_per_batch // 128) * 128
    lane = max(l for l in _LANE_CANDIDATES if l <= pad128)
    padded = -(-n_per_batch // lane) * lane
    rows = padded // lane
    max_rows = max(8, (_TARGET_TILE_BYTES // (lane * itemsize)) // 8 * 8)
    if rows <= max_rows:
        chunk_rows = rows                     # single chunk == full row extent
    else:
        chunk_rows = max_rows                 # multiple of 8 -> (8,128) friendly
        rows = -(-rows // chunk_rows) * chunk_rows
        padded = rows * lane
    return padded, lane, rows, chunk_rows


def _q_sample_pallas(sqrt_ac, sqrt_1mac, x_start, t, noise):
    orig_shape = x_start.shape
    B = orig_shape[0]
    n_per_batch = int(np.prod(orig_shape[1:]))
    dtype = x_start.dtype
    itemsize = jnp.dtype(dtype).itemsize

    # Schedule gather (B elements) in plain JAX — tiny, keeps the kernel simple.
    t = t.astype(jnp.int32)
    a_vals = sqrt_ac[t].astype(dtype)        # (B,)
    s_vals = sqrt_1mac[t].astype(dtype)      # (B,)

    padded, lane, rows, chunk_rows = _choose_tiling(n_per_batch, itemsize)
    num_chunks = rows // chunk_rows

    xf = x_start.reshape(B, n_per_batch)
    nf = noise.reshape(B, n_per_batch)
    if padded != n_per_batch:
        pad = padded - n_per_batch
        xf = jnp.pad(xf, ((0, 0), (0, pad)))
        nf = jnp.pad(nf, ((0, 0), (0, pad)))
    x3 = xf.reshape(B, rows, lane)
    n3 = nf.reshape(B, rows, lane)

    blk = pl.BlockSpec((1, chunk_rows, lane), lambda b, c: (b, c, 0))

    total = B * n_per_batch
    cost = pl.CostEstimate(flops=3 * total, transcendentals=0,
                           bytes_accessed=3 * total * itemsize)

    out3 = pl.pallas_call(
        _q_sample_kernel,
        out_shape=jax.ShapeDtypeStruct((B, rows, lane), dtype),
        grid_spec=pltpu.PrefetchScalarGridSpec(
            num_scalar_prefetch=0,
            grid=(B, num_chunks),
            in_specs=[
                pl.BlockSpec(memory_space=pltpu.SMEM),   # a_vals (B,)
                pl.BlockSpec(memory_space=pltpu.SMEM),   # s_vals (B,)
                blk,                                      # x
                blk,                                      # noise
            ],
            out_specs=blk,
        ),
        compiler_params=pltpu.CompilerParams(
            dimension_semantics=("parallel", "parallel"),
            vmem_limit_bytes=32 * 1024 * 1024),
        cost_estimate=cost,
    )(a_vals, s_vals, x3, n3)

    out = out3.reshape(B, padded)
    if padded != n_per_batch:
        out = out[:, :n_per_batch]
    return out.reshape(orig_shape)


# --------------------------------------------------------------------------
# Demo / self-check
# --------------------------------------------------------------------------
if __name__ == "__main__":
    key = jax.random.PRNGKey(0)
    kx, kn, kt = jax.random.split(key, 3)

    B, C, H, W = 2, 4, 16, 16
    T = 1000

    model = AbstractLowScaleModel(noise_schedule_config=dict(
        beta_schedule="linear", timesteps=T,
        linear_start=1e-4, linear_end=2e-2, cosine_s=8e-3))

    x = jax.random.normal(kx, (B, C, H, W), dtype=jnp.float32)
    noise = jax.random.normal(kn, (B, C, H, W), dtype=jnp.float32)
    t = jax.random.randint(kt, (B,), 0, T, dtype=jnp.int32)

    # forward: (x, None) — pure pass-through
    out_x, out_none = model(x)
    assert out_none is None
    np.testing.assert_allclose(np.asarray(out_x), np.asarray(x), rtol=0, atol=0)

    # q_sample hot path via Pallas
    qs = jax.block_until_ready(model.q_sample(x, t, noise))
    a = model.sqrt_alphas_cumprod[t].reshape(B, 1, 1, 1)
    s = model.sqrt_one_minus_alphas_cumprod[t].reshape(B, 1, 1, 1)
    ref = a * x + s * noise
    np.testing.assert_allclose(np.asarray(qs), np.asarray(ref),
                               rtol=1e-6, atol=1e-6)

    # extra check: an awkward shape that exercises the lane-padding path
    B2, C2, H2, W2 = 2, 3, 17, 19
    kx2, kn2, kt2 = jax.random.split(jax.random.PRNGKey(1), 3)
    x2 = jax.random.normal(kx2, (B2, C2, H2, W2), dtype=jnp.float32)
    n2 = jax.random.normal(kn2, (B2, C2, H2, W2), dtype=jnp.float32)
    t2 = jax.random.randint(kt2, (B2,), 0, T, dtype=jnp.int32)
    qs2 = jax.block_until_ready(model.q_sample(x2, t2, n2))
    a2 = model.sqrt_alphas_cumprod[t2].reshape(B2, 1, 1, 1)
    s2 = model.sqrt_one_minus_alphas_cumprod[t2].reshape(B2, 1, 1, 1)
    ref2 = a2 * x2 + s2 * n2
    np.testing.assert_allclose(np.asarray(qs2), np.asarray(ref2),
                               rtol=1e-6, atol=1e-6)

    print("KERNEL_OK")
</pallas_src>

<mosaic_0001>
module attributes {stable_mosaic.version = 11 : i64} {
  func.func @_q_sample_kernel(%arg0: i32, %arg1: i32, %arg2: memref<2xf32, #tpu.memory_space<smem>>, %arg3: memref<2xf32, #tpu.memory_space<smem>>, %arg4: memref<1x1x1024xf32, #tpu.memory_space<vmem>>, %arg5: memref<1x1x1024xf32, #tpu.memory_space<vmem>>, %arg6: memref<1x1x1024xf32, #tpu.memory_space<vmem>>) attributes {dimension_semantics = [#tpu.dimension_semantics<parallel>, #tpu.dimension_semantics<parallel>], iteration_bounds = array<i64: 2, 1>, scalar_prefetch = 0 : i64, scratch_operands = 0 : i64, tpu.core_type = #tpu.core_type<tc>, window_params = [{transform_indices = @transform_0, window_bounds = array<i64: 2>}, {transform_indices = @transform_1, window_bounds = array<i64: 2>}, {transform_indices = @transform_2, window_bounds = array<i64: 1, 1, 1024>}, {transform_indices = @transform_3, window_bounds = array<i64: 1, 1, 1024>}, {transform_indices = @transform_4, window_bounds = array<i64: 1, 1, 1024>}]} {
    %0 = arith.index_cast %arg0 : i32 to index
    %1 = memref.load %arg2[%0] : memref<2xf32, #tpu.memory_space<smem>>
    %2 = arith.index_cast %arg0 : i32 to index
    %3 = memref.load %arg3[%2] : memref<2xf32, #tpu.memory_space<smem>>
    %c0 = arith.constant 0 : index
    %c0_0 = arith.constant 0 : index
    %c0_1 = arith.constant 0 : index
    %4 = vector.load %arg4[%c0, %c0_0, %c0_1] : memref<1x1x1024xf32, #tpu.memory_space<vmem>>, vector<1x1x1024xf32>
    %5 = vector.broadcast %1 : f32 to vector<1x1x1024xf32>
    %6 = arith.mulf %5, %4 : vector<1x1x1024xf32>
    %c0_2 = arith.constant 0 : index
    %c0_3 = arith.constant 0 : index
    %c0_4 = arith.constant 0 : index
    %7 = vector.load %arg5[%c0_2, %c0_3, %c0_4] : memref<1x1x1024xf32, #tpu.memory_space<vmem>>, vector<1x1x1024xf32>
    %8 = vector.broadcast %3 : f32 to vector<1x1x1024xf32>
    %9 = arith.mulf %8, %7 : vector<1x1x1024xf32>
    %10 = arith.addf %6, %9 : vector<1x1x1024xf32>
    %c0_5 = arith.constant 0 : index
    %c0_6 = arith.constant 0 : index
    %c0_7 = arith.constant 0 : index
    %11 = vector.load %arg6[%c0_5, %c0_6, %c0_7] : memref<1x1x1024xf32, #tpu.memory_space<vmem>>, vector<1x1x1024xf32>
    tpu.vector_store %arg6[%c0_5, %c0_6, %c0_7], %10 {strides = array<i32>} : memref<1x1x1024xf32, #tpu.memory_space<vmem>>, vector<1x1x1024xf32>,
    return
  }
  func.func @transform_0(%arg0: i32, %arg1: i32) -> i32 {
    %c0_i32 = arith.constant 0 : i32
    %c0_i32_0 = arith.constant 0 : i32
    return %c0_i32 : i32
  }
  func.func @transform_1(%arg0: i32, %arg1: i32) -> i32 {
    %c0_i32 = arith.constant 0 : i32
    %c0_i32_0 = arith.constant 0 : i32
    return %c0_i32 : i32
  }
  func.func @transform_2(%arg0: i32, %arg1: i32) -> (i32, i32, i32) {
    %c0_i32 = arith.constant 0 : i32
    %c0_i32_0 = arith.constant 0 : i32
    return %arg0, %arg1, %c0_i32 : i32, i32, i32
  }
  func.func @transform_3(%arg0: i32, %arg1: i32) -> (i32, i32, i32) {
    %c0_i32 = arith.constant 0 : i32
    %c0_i32_0 = arith.constant 0 : i32
    return %arg0, %arg1, %c0_i32 : i32, i32, i32
  }
  func.func @transform_4(%arg0: i32, %arg1: i32) -> (i32, i32, i32) {
    %c0_i32 = arith.constant 0 : i32
    %c0_i32_0 = arith.constant 0 : i32
    return %arg0, %arg1, %c0_i32 : i32, i32, i32
  }
}

</mosaic_0001>

<llo_original>
// kernel: tpu_custom_call.1
$region0: #{tpu_custom_call.1}
  #allocation0 [shape = 'u32[]', space=smem, size = 0x4, offset = 0x4, fixed_abs, tag = 'smem constant byte address 0x4 - core index']
  #allocation1 [shape = 'u32[144,128]{1,0:T(1,128)}', space=vmem, size = 0x12000, scoped, tag = 'internal scratch']
  %s0 = inlined_call_operand.hbm [shape: f32[2], index: 0, kind: input, shape index: {}]
  %s1 = inlined_call_operand.vmem [shape: f32[2], index: 1, kind: input, shape index: {}]
  %s2 = inlined_call_operand.hbm [shape: f32[2,1,1024], index: 2, kind: input, shape index: {}]
  %s3 = inlined_call_operand.hbm [shape: f32[2,1,1024], index: 3, kind: input, shape index: {}]
  %s4 = inlined_call_operand.hbm [shape: f32[2,1,1024], index: 4, kind: output, shape index: {}]
  %s5 = sld [smem:[#allocation0]]
  $region65: #{tpu_custom_call.1} parent=0
    _
  %s7 = ssub.s32 1, %s5
  %s8 = scalar_select 0, %s7, %s5
  $region1: #{tpu_custom_call.1} parent=0
    #allocation2 [shape = 'u8[512]{0}', space=smem, size = 0x200, scoped, tag = 'input window, operand 0, single buffered']
    #allocation3 [shape = 's32[2]{0}', space=sflag, size = 0x8, scoped, tag = 'scoped memory for tpu_custom_call.1']
    #allocation4 [shape = 's32[2]{0}', space=sflag, size = 0x8, scoped, tag = 'scoped memory for tpu_custom_call.1']
    #allocation5 [shape = 's32[2]{0}', space=sflag, size = 0x8, scoped, tag = 'scoped memory for tpu_custom_call.1']
    #allocation6 [shape = 's32[2]{0}', space=sflag, size = 0x8, scoped, tag = 'scoped memory for tpu_custom_call.1']
    #allocation7 [shape = 'u8[512]{0}', space=smem, size = 0x200, scoped, tag = 'input window, operand 1, single buffered']
    #allocation8 [shape = 'u8[8192]{0}', space=vmem, size = 0x2000, scoped, tag = 'input window, operand 2']
    #allocation9 [shape = 'u8[8192]{0}', space=vmem, size = 0x2000, scoped, tag = 'input window, operand 3']
    #allocation10 [shape = 's32[2]{0}', space=sflag, size = 0x8, scoped, tag = 'scoped memory for tpu_custom_call.1']
    #allocation11 [shape = 'u8[8192]{0}', space=vmem, size = 0x2000, scoped, tag = 'output window, operand 0']
    %9 = vsyncpa [#allocation5], 0
    %10 = vsyncpa [#allocation6], 0
    %11 = vsyncpa [#allocation3], 0
    %s12 = scalar_lea.sflag [#allocation3], 1
    %13 = vsyncpa %s12, 0
    %14 = vsyncpa [#allocation10], 0
    %s15 = scalar_lea.sflag [#allocation10], 1
    %16 = vsyncpa %s15, 0
    %17 = vsyncpa [#allocation4], 0
    %s18 = scalar_lea.sflag [#allocation4], 1
    %19 = vsyncpa %s18, 0
    loop: start=0, step=1, limit=4
    $region2: #{tpu_custom_call.1} parent=1 // loop_pre_header
      _
    $region3: #{tpu_custom_call.1} parent=1 // loop_header
      %s21 = sphi 0, %s25
      %p22 = scmp.ge.s32.totalorder %s21, 4
      %s28 = sphi 0, %s40
      %s29 = sphi 0, %s36
      %s30 = sphi 0, %s28
      %s31 = sphi 0, %s29
      %s32 = sphi 0, %s30
      %s33 = sphi 0, %s31
      %s41 = sphi 0, %s41
      %s43 = sphi 0, %s41
      %s44 = sphi 0, %s43
      %s58 = sphi 0, %s44
      %s62 = sphi 0, %s62
      %s64 = sphi 0, %s62
      %s65 = sphi 0, %s64
      %s79 = sphi 0, %s65
      %s87 = sphi 0, %s89
      %s90 = sphi 0, %s87
      %s91 = sphi 0, %s90
      %s107 = sphi 0, %s91
      %s115 = sphi 0, %s117
      %s118 = sphi 0, %s115
      %s119 = sphi 0, %s118
      %s135 = sphi 0, %s119
      %s143 = sphi 0, %s145
      %s146 = sphi 0, %s143
      %s147 = sphi 0, %s146
      %s163 = sphi 0, %s147
    $region4: #{tpu_custom_call.1} parent=1 // loop_header_branch
      %24 = sbr.rel (%p22) target = $region8
    $region5: #{tpu_custom_call.1} parent=1 // loop_body
      %s26 = ssub.s32 %s21, 1
      %s27 = ssub.s32 %s21, 2
      %s34 = sadd.s32 1, %s29
      %p35 = scmp.ge.s32.totalorder %s34, 1
      %s36 = scalar_select %p35, 0, %s34
      %s37 = sadd.s32 1, %s28
      %s38 = scalar_select %p35, %s37, %s28
      %p39 = scmp.ge.s32.totalorder %s38, 2
      %s40 = scalar_select %p39, 0, %s38
      %s42 = sadd.s32 %s41, 1
      %p45 = scmp.eq.s32.totalorder %s21, 1
      %p46 = scmp.ne.s32.totalorder %s41, %s43
      %p47 = scmp.eq.s32.totalorder %s21, 0
      %p48 = por %p46, %p47
      %p49 = scmp.ne.s32.totalorder %s41, %s43
      %p50 = scmp.eq.s32.totalorder %s26, 1
      %p51 = por %p49, %p50
      %p52 = scmp.ne.s32.totalorder %s43, %s44
      %p53 = scmp.eq.s32.totalorder %s26, 0
      %p54 = por %p52, %p53
      %p55 = scmp.ne.s32.totalorder %s43, %s44
      %p56 = scmp.eq.s32.totalorder %s27, 1
      %p57 = por %p55, %p56
      %p59 = scmp.ne.s32.totalorder %s44, %s58
      %p60 = scmp.eq.s32.totalorder %s27, 0
      %p61 = por %p59, %p60
      %s63 = sadd.s32 %s62, 1
      %p66 = scmp.eq.s32.totalorder %s21, 1
      %p67 = scmp.ne.s32.totalorder %s62, %s64
      %p68 = scmp.eq.s32.totalorder %s21, 0
      %p69 = por %p67, %p68
      %p70 = scmp.ne.s32.totalorder %s62, %s64
      %p71 = scmp.eq.s32.totalorder %s26, 1
      %p72 = por %p70, %p71
      %p73 = scmp.ne.s32.totalorder %s64, %s65
      %p74 = scmp.eq.s32.totalorder %s26, 0
      %p75 = por %p73, %p74
      %p76 = scmp.ne.s32.totalorder %s64, %s65
      %p77 = scmp.eq.s32.totalorder %s27, 1
      %p78 = por %p76, %p77
      %p80 = scmp.ne.s32.totalorder %s65, %s79
      %p81 = scmp.eq.s32.totalorder %s27, 0
      %p82 = por %p80, %p81
      %s83 = ssub.s32 %s28, %s40
      %s84 = ssub.s32 %s29, %s36
      %s85 = sor.u32 %s83, %s84
      %p86 = scmp.eq.s32.totalorder %s85, 0
      %s88 = sadd.s32 %s87, 1
      %s89 = scalar_select %p86, %s87, %s88
      %p92 = pneg %p86
      %p93 = scmp.eq.s32.totalorder %s21, 1
      %p94 = por %p92, %p93
      %p95 = scmp.ne.s32.totalorder %s87, %s90
      %p96 = scmp.eq.s32.totalorder %s21, 0
      %p97 = por %p95, %p96
      %p98 = scmp.ne.s32.totalorder %s87, %s90
      %p99 = scmp.eq.s32.totalorder %s26, 1
      %p100 = por %p98, %p99
      %p101 = scmp.ne.s32.totalorder %s90, %s91
      %p102 = scmp.eq.s32.totalorder %s26, 0
      %p103 = por %p101, %p102
      %p104 = scmp.ne.s32.totalorder %s90, %s91
      %p105 = scmp.eq.s32.totalorder %s27, 1
      %p106 = por %p104, %p105
      %p108 = scmp.ne.s32.totalorder %s91, %s107
      %p109 = scmp.eq.s32.totalorder %s27, 0
      %p110 = por %p108, %p109
      %s111 = ssub.s32 %s28, %s40
      %s112 = ssub.s32 %s29, %s36
      %s113 = sor.u32 %s111, %s112
      %p114 = scmp.eq.s32.totalorder %s113, 0
      %s116 = sadd.s32 %s115, 1
      %s117 = scalar_select %p114, %s115, %s116
      %p120 = pneg %p114
      %p121 = scmp.eq.s32.totalorder %s21, 1
      %p122 = por %p120, %p121
      %p123 = scmp.ne.s32.totalorder %s115, %s118
      %p124 = scmp.eq.s32.totalorder %s21, 0
      %p125 = por %p123, %p124
      %p126 = scmp.ne.s32.totalorder %s115, %s118
      %p127 = scmp.eq.s32.totalorder %s26, 1
      %p128 = por %p126, %p127
      %p129 = scmp.ne.s32.totalorder %s118, %s119
      %p130 = scmp.eq.s32.totalorder %s26, 0
      %p131 = por %p129, %p130
      %p132 = scmp.ne.s32.totalorder %s118, %s119
      %p133 = scmp.eq.s32.totalorder %s27, 1
      %p134 = por %p132, %p133
      %p136 = scmp.ne.s32.totalorder %s119, %s135
      %p137 = scmp.eq.s32.totalorder %s27, 0
      %p138 = por %p136, %p137
      %s139 = ssub.s32 %s28, %s40
      %s140 = ssub.s32 %s29, %s36
      %s141 = sor.u32 %s139, %s140
      %p142 = scmp.eq.s32.totalorder %s141, 0
      %s144 = sadd.s32 %s143, 1
      %s145 = scalar_select %p142, %s143, %s144
      %p148 = pneg %p142
      %p149 = scmp.eq.s32.totalorder %s21, 1
      %p150 = por %p148, %p149
      %p151 = scmp.ne.s32.totalorder %s143, %s146
      %p152 = scmp.eq.s32.totalorder %s21, 0
      %p153 = por %p151, %p152
      %p154 = scmp.ne.s32.totalorder %s143, %s146
      %p155 = scmp.eq.s32.totalorder %s26, 1
      %p156 = por %p154, %p155
      %p157 = scmp.ne.s32.totalorder %s146, %s147
      %p158 = scmp.eq.s32.totalorder %s26, 0
      %p159 = por %p157, %p158
      %p160 = scmp.ne.s32.totalorder %s146, %s147
      %p161 = scmp.eq.s32.totalorder %s27, 1
      %p162 = por %p160, %p161
      %p164 = scmp.ne.s32.totalorder %s147, %s163
      %p165 = scmp.eq.s32.totalorder %s27, 0
      %p166 = por %p164, %p165
      %p167 = scmp.le.s32.totalorder 1, %s21
      %p168 = scmp.lt.s32.totalorder %s21, 3
      %p169 = pnand %p167, %p168
      %p170 = pneg %p169
      // Predicated region
      $region9: #{tpu_custom_call.1} parent=5 // pred_check
        _
      $region10: #{tpu_custom_call.1} parent=5 // pred_check_branch
        %172 = sbr.rel (%p169) target = $region12
      $region11: #{tpu_custom_call.1} parent=5 // pred_region
        %s173 = ssub.s32 %s21, 1
        // Predicated region
        $region13: #{tpu_custom_call.1} parent=11 // pred_check
          %p174 = pneg %p54
        $region14: #{tpu_custom_call.1} parent=11 // pred_check_branch
          %176 = sbr.rel (%p174) target = $region16
        $region15: #{tpu_custom_call.1} parent=11 // pred_region
          %s178 = ssub.s32 16, 16
          %179 = vsyncadd [#allocation5], %s178
          %182 = dma.hbm_to_smem %s0, 16, [#allocation2], [#allocation5]
        $region16: #{tpu_custom_call.1} parent=11 // pred_fallthru
          _
        // Predicated region
        $region17: #{tpu_custom_call.1} parent=11 // pred_check
          %p183 = pneg %p75
        $region18: #{tpu_custom_call.1} parent=11 // pred_check_branch
          %185 = sbr.rel (%p183) target = $region20
        $region19: #{tpu_custom_call.1} parent=11 // pred_region
          %s187 = ssub.s32 16, 16
          %188 = vsyncadd [#allocation6], %s187
          %s190 = sshll.u32 %s1, 4
          %s191 = int_to_ptr.vmem [resolvable:$true] %s190
          %193 = dma.vmem_to_smem %s191, 16, [#allocation7], [#allocation6]
        $region20: #{tpu_custom_call.1} parent=11 // pred_fallthru
          _
      $region12: #{tpu_custom_call.1} parent=5 // pred_fallthru
        _
      %p194 = scmp.lt.s32.totalorder %s21, 2
      // Predicated region
      $region21: #{tpu_custom_call.1} parent=5 // pred_check
        %p195 = pneg %p194
      $region22: #{tpu_custom_call.1} parent=5 // pred_check_branch
        %197 = sbr.rel (%p195) target = $region24
      $region23: #{tpu_custom_call.1} parent=5 // pred_region
        // Predicated region
        $region25: #{tpu_custom_call.1} parent=23 // pred_check
          %p198 = pneg %p97
        $region26: #{tpu_custom_call.1} parent=23 // pred_check_branch
          %200 = sbr.rel (%p198) target = $region28
        $region27: #{tpu_custom_call.1} parent=23 // pred_region
          %s201 = sand.u32 %s87, 1
          %s202 = scalar_lea.sflag [#allocation3], %s201
          %s203 = sand.u32 %s87, 1
          %s204 = smul.addr %s203, 8
          %s205 = scalar_lea.vmem [#allocation8], %s204
          %s207 = ssub.s32 128, 128
          %208 = vsyncadd %s202, %s207
          %s209 = smul.addr %s29, 8
          %s210 = smul.addr %s28, 8
          %s211 = sadd.s32 %s209, %s210
          %s212 = smul.addr %s211, 16
          %s213 = scalar_lea.hbm %s2, %s212
          %s215 = sshll.u32 %s205, 4
          %s216 = int_to_ptr.vmem [resolvable:$true] %s215
          %218 = dma.hbm_to_vmem [thread:$0]  %s213, 128, %s216, %s202
        $region28: #{tpu_custom_call.1} parent=23 // pred_fallthru
          _
        // Predicated region
        $region29: #{tpu_custom_call.1} parent=23 // pred_check
          %p219 = pneg %p125
        $region30: #{tpu_custom_call.1} parent=23 // pred_check_branch
          %221 = sbr.rel (%p219) target = $region32
        $region31: #{tpu_custom_call.1} parent=23 // pred_region
          %s222 = sand.u32 %s115, 1
          %s223 = scalar_lea.sflag [#allocation10], %s222
          %s224 = sand.u32 %s115, 1
          %s225 = smul.addr %s224, 8
          %s226 = scalar_lea.vmem [#allocation9], %s225
          %s228 = ssub.s32 128, 128
          %229 = vsyncadd %s223, %s228
          %s230 = smul.addr %s29, 8
          %s231 = smul.addr %s28, 8
          %s232 = sadd.s32 %s230, %s231
          %s233 = smul.addr %s232, 16
          %s234 = scalar_lea.hbm %s3, %s233
          %s236 = sshll.u32 %s226, 4
          %s237 = int_to_ptr.vmem [resolvable:$true] %s236
          %239 = dma.hbm_to_vmem [thread:$0]  %s234, 128, %s237, %s223
        $region32: #{tpu_custom_call.1} parent=23 // pred_fallthru
          _
      $region24: #{tpu_custom_call.1} parent=5 // pred_fallthru
        _
      %p240 = scmp.le.s32.totalorder 1, %s21
      %p241 = scmp.lt.s32.totalorder %s21, 3
      %p242 = pnand %p240, %p241
      %p243 = pneg %p242
      // Predicated region
      $region33: #{tpu_custom_call.1} parent=5 // pred_check
        _
      $region34: #{tpu_custom_call.1} parent=5 // pred_check_branch
        %245 = sbr.rel (%p242) target = $region36
      $region35: #{tpu_custom_call.1} parent=5 // pred_region
        %s246 = ssub.s32 %s21, 1
        // Predicated region
        $region37: #{tpu_custom_call.1} parent=35 // pred_check
          %p247 = pneg %p54
        $region38: #{tpu_custom_call.1} parent=35 // pred_check_branch
          %249 = sbr.rel (%p247) target = $region40
        $region39: #{tpu_custom_call.1} parent=35 // pred_region
          %250 = dma.done [#allocation5], 16
        $region40: #{tpu_custom_call.1} parent=35 // pred_fallthru
          _
        // Predicated region
        $region41: #{tpu_custom_call.1} parent=35 // pred_check
          %p251 = pneg %p75
        $region42: #{tpu_custom_call.1} parent=35 // pred_check_branch
          %253 = sbr.rel (%p251) target = $region44
        $region43: #{tpu_custom_call.1} parent=35 // pred_region
          %254 = dma.done [#allocation6], 16
        $region44: #{tpu_custom_call.1} parent=35 // pred_fallthru
          _
        %s255 = sand.u32 %s90, 1
        %s256 = scalar_lea.sflag [#allocation3], %s255
        %s257 = sand.u32 %s90, 1
        %s258 = smul.addr %s257, 8
        %s259 = scalar_lea.vmem [#allocation8], %s258
        // Predicated region
        $region45: #{tpu_custom_call.1} parent=35 // pred_check
          %p260 = pneg %p103
        $region46: #{tpu_custom_call.1} parent=35 // pred_check_branch
          %262 = sbr.rel (%p260) target = $region48
        $region47: #{tpu_custom_call.1} parent=35 // pred_region
          %263 = dma.done %s256, 128
        $region48: #{tpu_custom_call.1} parent=35 // pred_fallthru
          _
        %s264 = sand.u32 %s118, 1
        %s265 = scalar_lea.sflag [#allocation10], %s264
        %s266 = sand.u32 %s118, 1
        %s267 = smul.addr %s266, 8
        %s268 = scalar_lea.vmem [#allocation9], %s267
        // Predicated region
        $region49: #{tpu_custom_call.1} parent=35 // pred_check
          %p269 = pneg %p131
        $region50: #{tpu_custom_call.1} parent=35 // pred_check_branch
          %271 = sbr.rel (%p269) target = $region52
        $region51: #{tpu_custom_call.1} parent=35 // pred_region
          %272 = dma.done %s265, 128
        $region52: #{tpu_custom_call.1} parent=35 // pred_fallthru
          _
        %273 = sfence
        %p274 = pneg %p54
        %p275 = pneg %p51
        %p276 = pneg %p75
        %p277 = pneg %p72
        %s278 = sand.u32 %s90, 1
        %s279 = scalar_lea.sflag [#allocation3], %s278
        %s280 = sand.u32 %s90, 1
        %s281 = smul.addr %s280, 8
        %s282 = scalar_lea.vmem [#allocation8], %s281
        %p283 = pneg %p103
        %p284 = pneg %p100
        %s285 = sand.u32 %s118, 1
        %s286 = scalar_lea.sflag [#allocation10], %s285
        %s287 = sand.u32 %s118, 1
        %s288 = smul.addr %s287, 8
        %s289 = scalar_lea.vmem [#allocation9], %s288
        %p290 = pneg %p131
        %p291 = pneg %p128
        %p292 = pneg %p159
        %p293 = pneg %p156
        %s294 = sand.u32 %s146, 1
        %s295 = scalar_lea.sflag [#allocation4], %s294
        %s296 = sand.u32 %s146, 1
        %s297 = smul.addr %s296, 8
        %s298 = scalar_lea.vmem [#allocation11], %s297
        %s299 = sld [smem:[#allocation2 + %s30]]
        %s300 = sld [smem:[#allocation7 + %s30]]
        %v301 = vld [vmem:[%s259] sm:$0xff]
        %v302 = vstv %s299
        %v303 = vmul.f32 %v302, %v301
        %v304 = vld [vmem:[%s268] sm:$0xff]
        %v305 = vstv %s300
        %v306 = vmul.f32 %v305, %v304
        %v307 = vadd.f32 %v303, %v306
        %308 = vst [vmem:[%s298] sm:$0xff] %v307
        %s309 = sand.u32 %s146, 1
        %s310 = scalar_lea.sflag [#allocation4], %s309
        %s311 = sand.u32 %s146, 1
        %s312 = smul.addr %s311, 8
        %s313 = scalar_lea.vmem [#allocation11], %s312
        // Predicated region
        $region53: #{tpu_custom_call.1} parent=35 // pred_check
          %p314 = pneg %p156
        $region54: #{tpu_custom_call.1} parent=35 // pred_check_branch
          %316 = sbr.rel (%p314) target = $region56
        $region55: #{tpu_custom_call.1} parent=35 // pred_region
          %s318 = ssub.s32 128, 128
          %319 = vsyncadd %s310, %s318
          %s320 = smul.addr %s31, 8
          %s321 = smul.addr %s30, 8
          %s322 = sadd.s32 %s320, %s321
          %s323 = smul.addr %s322, 16
          %s324 = scalar_lea.hbm %s4, %s323
          %s326 = sshll.u32 %s313, 4
          %s327 = int_to_ptr.vmem [resolvable:$true] %s326
          %329 = dma.vmem_to_hbm [thread:$0]  %s327, 128, %s324, %s310
        $region56: #{tpu_custom_call.1} parent=35 // pred_fallthru
          _
      $region36: #{tpu_custom_call.1} parent=5 // pred_fallthru
        _
      %p330 = scmp.le.s32.totalorder 2, %s21
      // Predicated region
      $region57: #{tpu_custom_call.1} parent=5 // pred_check
        %p331 = pneg %p330
      $region58: #{tpu_custom_call.1} parent=5 // pred_check_branch
        %333 = sbr.rel (%p331) target = $region60
      $region59: #{tpu_custom_call.1} parent=5 // pred_region
        %s334 = ssub.s32 %s21, 2
        // Predicated region
        $region61: #{tpu_custom_call.1} parent=59 // pred_check
          %p335 = pneg %p162
        $region62: #{tpu_custom_call.1} parent=59 // pred_check_branch
          %337 = sbr.rel (%p335) target = $region64
        $region63: #{tpu_custom_call.1} parent=59 // pred_region
          %s338 = sand.u32 %s147, 1
          %s339 = scalar_lea.sflag [#allocation4], %s338
          %s340 = sand.u32 %s147, 1
          %s341 = smul.addr %s340, 8
          %s342 = scalar_lea.vmem [#allocation11], %s341
          %343 = dma.done %s339, 128
        $region64: #{tpu_custom_call.1} parent=59 // pred_fallthru
          _
      $region60: #{tpu_custom_call.1} parent=5 // pred_fallthru
        _
    $region6: #{tpu_custom_call.1} parent=1 // loop_footer
      %s25 = sadd.s32 1, %s21
    $region7: #{tpu_custom_call.1} parent=1 // loop_footer_branch
      %20 = sbr.rel target = $region3
    $region8: #{tpu_custom_call.1} parent=1 // loop_exit
      _
    %344 = vsyncpa [#allocation3], 1
    %s345 = scalar_lea.sflag [#allocation3], 1
    %346 = vsyncpa %s345, 1
    %347 = vsyncpa [#allocation10], 1
    %s348 = scalar_lea.sflag [#allocation10], 1
    %349 = vsyncpa %s348, 1
    %350 = vsyncpa [#allocation4], 1
    %s351 = scalar_lea.sflag [#allocation4], 1
    %352 = vsyncpa %s351, 1
    %353 = vsyncpa [#allocation5], 1
    %s354 = scalar_lea.sflag [#allocation5], 1
    %355 = vsyncpa %s354, 1
    %356 = vsyncpa [#allocation6], 1
    %s357 = scalar_lea.sflag [#allocation6], 1
    %358 = vsyncpa %s357, 1

</llo_original>
